<compile_context>
chip_gen: v7x
topology: tpu7x:2x2x1
jax: 0.10.0
libtpu: 0.0.40
codegen_flags: <defaults>
</compile_context>

<pallas_src>
import jax
import jax.numpy as jnp
from jax import lax
from jax.experimental import pallas as pl
from jax.experimental.pallas import tpu as pltpu


def mlp_kernel(x_ref, w1_ref, b1_ref, w2_ref, b2_ref, o_ref):
    # x_ref : (TB, D)  activation tile, native (batch, feature) layout
    # w1_ref: (H, D)   fc1.weight, PyTorch (out, in) layout
    # b1_ref: (H, 1)   fc1.bias as a column
    # w2_ref: (H, 1)   fc2.weight transposed once at init
    # b2_ref: (1, 1)   fc2.bias
    # o_ref : (1, TB)  lane-dense output tile (batch on the lane axis)
    #
    # fc1 on the MXU, contracting on D of both operands so the feature-major
    # "flip" of x happens inside the kernel (transposed MXU operand / XLU)
    # instead of as a separate XLA HBM pass: (H, D) x (TB, D) -> (H, TB).
    h = lax.dot_general(
        w1_ref[...], x_ref[...],
        dimension_numbers=(((1,), (1,)), ((), ())),
        preferred_element_type=jnp.float32,
    )
    h = jnp.maximum(h + b1_ref[...], 0.0)  # bias + ReLU on the VPU
    # fc2 as VPU multiply + sublane reduce (keeps the N=1 matmul off the MXU
    # and keeps the result lane-dense): (H, TB) * (H, 1) -> sum over H -> (1, TB).
    y = jnp.sum(h * w2_ref[...], axis=0, keepdims=True) + b2_ref[...]
    # Sigmoid: exp and approx reciprocal both land on the EUP slot.
    # (pl.reciprocal(approx=True) adds ~1e-4 abs error; exp(-y)=inf saturates
    # cleanly to 0 via reciprocal(inf), so no NaN risk.)
    o_ref[...] = pl.reciprocal(1.0 + jnp.exp(-y), approx=True).astype(o_ref.dtype)


def _round_up(v, m):
    return ((v + m - 1) // m) * m


_MAX_BLOCK_B = 32768                 # ~4 MiB x-tile DMA per step at D=32 / f32
_VMEM_BUDGET = 24 * 1024 * 1024      # headroom under the 32 MiB scoped limit


def _choose_block_b(batch, feat, itemsize):
    """Largest lane-aligned batch tile that fits VMEM and keeps nb >= 2."""
    # Double-buffered x tile (+ f32 out tile) must fit under the scoped VMEM
    # limit alongside the tiny resident weights and the (H, TB) intermediate.
    per_col = 2 * (feat * itemsize + 4)
    tb = min(_MAX_BLOCK_B, (_VMEM_BUDGET // per_col) // 128 * 128)
    # Keep at least 2 grid steps whenever the batch allows it so the "parallel"
    # grid axis can be sharded across both TensorCores on v7x (harmless on
    # single-core v5e/v6e: it just trims dead padding in the last tile).
    tb = min(tb, _round_up(pl.cdiv(batch, 2), 128))
    return max(128, tb)


def simple_mlp_forward(x, params, *, block_b=None, compute_dtype=None):
    """Fused SimpleMLP forward.

    x      : (B, D) PyTorch-style (batch, features).
    params : (w1 (H,D), b1 (H,1), w2 (H,1), b2 (1,1)) from init_params.
    Returns: (B, 1) float32 (same math as the PyTorch module).
    """
    w1, b1_col, w2_col, b2_col = params
    if compute_dtype is not None:
        # Halves the dominant HBM traffic (x streaming); worthwhile mainly on
        # v5e and only if XLA fuses this cast into the producer of x.
        # Accumulation stays f32 via preferred_element_type.
        x = x.astype(compute_dtype)
        w1 = w1.astype(compute_dtype)

    B, D = x.shape
    H = w1.shape[0]
    if block_b is None:
        block_b = _choose_block_b(B, D, jnp.dtype(x.dtype).itemsize)
    assert block_b % 128 == 0, "batch tile must be lane-aligned (multiple of 128)"

    # Last tile may be partial: OOB output columns are masked on write and the
    # undefined rows in the padded x tile only feed those masked columns, so no
    # pad/copy of x is needed for ragged B.
    nb = pl.cdiv(B, block_b)

    const = lambda shape: pl.BlockSpec(shape, lambda i: (0, 0))  # VMEM-resident

    out = pl.pallas_call(
        mlp_kernel,
        out_shape=jax.ShapeDtypeStruct((1, B), jnp.float32),
        grid=(nb,),
        in_specs=[
            pl.BlockSpec((block_b, D), lambda i: (i, 0)),  # stream batch tiles
            const((H, D)),
            const((H, 1)),
            const((H, 1)),
            const((1, 1)),
        ],
        out_specs=pl.BlockSpec((1, block_b), lambda i: (0, i)),
        compiler_params=pltpu.CompilerParams(
            # Batch tiles are independent -> shard across TensorCores on v7x.
            dimension_semantics=("parallel",),
            # Working set at TB=32768 / D=32 / f32: 2 x 4 MiB x buffers +
            # 2 x 128 KiB out buffers + ~2 MiB (H, TB) intermediate + weights;
            # well inside 32 MiB on v5e/v6e (128 MiB VMEM) and v7x (64 MiB).
            vmem_limit_bytes=32 * 1024 * 1024,
        ),
        cost_estimate=pl.CostEstimate(
            flops=2 * B * H * D + 4 * B * H + 3 * B,
            transcendentals=2 * B,  # exp + reciprocal per output column
            bytes_accessed=(B * D + H * D + 2 * H + 1) * x.dtype.itemsize + 4 * B,
        ),
    )(x, w1, b1_col, w2_col, b2_col)

    return out.reshape(B, 1)


def init_params(key, input_dim, hidden=16):
    """PyTorch-style nn.Linear init, stored directly in kernel layout so the
    forward pass performs no per-call transposes/reshapes:
      w1: (H, D) == fc1.weight        b1: (H, 1) == fc1.bias as a column
      w2: (H, 1) == fc2.weight.T      b2: (1, 1) == fc2.bias
    """
    k1, k2, k3, k4 = jax.random.split(key, 4)
    bound1 = 1.0 / (input_dim ** 0.5)
    w1 = jax.random.uniform(k1, (hidden, input_dim), jnp.float32, -bound1, bound1)
    b1 = jax.random.uniform(k2, (hidden, 1), jnp.float32, -bound1, bound1)
    bound2 = 1.0 / (hidden ** 0.5)
    w2 = jax.random.uniform(k3, (hidden, 1), jnp.float32, -bound2, bound2)
    b2 = jax.random.uniform(k4, (1, 1), jnp.float32, -bound2, bound2)
    return w1, b1, w2, b2


def reference_forward(x, params):
    """Plain-JAX reference with the same math as the PyTorch module."""
    w1, b1_col, w2_col, b2_col = params
    h = jnp.maximum(x @ w1.T + b1_col[:, 0], 0.0)
    return jax.nn.sigmoid(h @ w2_col + b2_col)


if __name__ == "__main__":
    key = jax.random.PRNGKey(0)
    kx1, kx2, kp = jax.random.split(key, 3)

    input_dim = 32
    params = init_params(kp, input_dim)

    # Tolerance 2e-3 because the sigmoid uses the EUP approx reciprocal.
    tol = dict(atol=2e-3, rtol=2e-3)

    # Small batch: single partial tile (B < 128), exercises masked writes.
    x1 = jax.random.normal(kx1, (8, input_dim), dtype=jnp.float32)
    out1 = jax.block_until_ready(simple_mlp_forward(x1, params))
    ref1 = reference_forward(x1, params)
    assert out1.shape == (8, 1)
    assert jnp.allclose(out1, ref1, **tol), float(jnp.max(jnp.abs(out1 - ref1)))

    # Ragged batch: auto block_b -> 256, grid of 2 with a partial last tile.
    x2 = jax.random.normal(kx2, (300, input_dim), dtype=jnp.float32)
    out2 = jax.block_until_ready(simple_mlp_forward(x2, params))
    ref2 = reference_forward(x2, params)
    assert out2.shape == (300, 1)
    assert jnp.allclose(out2, ref2, **tol), float(jnp.max(jnp.abs(out2 - ref2)))

    # Explicit small tile: grid of 3, exercises multi-step pipelining path.
    out3 = jax.block_until_ready(simple_mlp_forward(x2, params, block_b=128))
    assert jnp.allclose(out3, ref2, **tol), float(jnp.max(jnp.abs(out3 - ref2)))

    print("KERNEL_OK")
</pallas_src>

<mosaic_0001>
module attributes {stable_mosaic.version = 11 : i64} {
  func.func @mlp_kernel(%arg0: i32, %arg1: memref<128x32xf32, #tpu.memory_space<vmem>>, %arg2: memref<16x32xf32, #tpu.memory_space<vmem>>, %arg3: memref<16x1xf32, #tpu.memory_space<vmem>>, %arg4: memref<16x1xf32, #tpu.memory_space<vmem>>, %arg5: memref<1x1xf32, #tpu.memory_space<vmem>>, %arg6: memref<1x128xf32, #tpu.memory_space<vmem>>) attributes {dimension_semantics = [#tpu.dimension_semantics<parallel>], iteration_bounds = array<i64: 1>, scalar_prefetch = 0 : i64, scratch_operands = 0 : i64, tpu.core_type = #tpu.core_type<tc>, window_params = [{transform_indices = @transform_0, window_bounds = array<i64: 128, 32>}, {pipeline_mode = #tpu.pipeline_mode<synchronous>, transform_indices = @transform_1, window_bounds = array<i64: 16, 32>}, {pipeline_mode = #tpu.pipeline_mode<synchronous>, transform_indices = @transform_2, window_bounds = array<i64: 16, 1>}, {pipeline_mode = #tpu.pipeline_mode<synchronous>, transform_indices = @transform_3, window_bounds = array<i64: 16, 1>}, {pipeline_mode = #tpu.pipeline_mode<synchronous>, transform_indices = @transform_4, window_bounds = array<i64: 1, 1>}, {transform_indices = @transform_5, window_bounds = array<i64: 1, 128>}]} {
    %c0 = arith.constant 0 : index
    %c0_0 = arith.constant 0 : index
    %0 = vector.load %arg2[%c0, %c0_0] : memref<16x32xf32, #tpu.memory_space<vmem>>, vector<16x32xf32>
    %c0_1 = arith.constant 0 : index
    %c0_2 = arith.constant 0 : index
    %1 = vector.load %arg1[%c0_1, %c0_2] : memref<128x32xf32, #tpu.memory_space<vmem>>, vector<128x32xf32>
    %cst = arith.constant dense<0.000000e+00> : vector<16x128xf32>
    %2 = tpu.matmul %0, %1, %cst {dimension_numbers = #tpu.dot_dimension_numbers<[1], [1], [0], [0], [0, 0, 1, 0], [], []>} : vector<16x32xf32>, vector<128x32xf32>, vector<16x128xf32> -> vector<16x128xf32>
    %c0_3 = arith.constant 0 : index
    %c0_4 = arith.constant 0 : index
    %3 = vector.load %arg3[%c0_3, %c0_4] : memref<16x1xf32, #tpu.memory_space<vmem>>, vector<16x1xf32>
    %4 = vector.broadcast %3 : vector<16x1xf32> to vector<16x128xf32>
    %5 = arith.addf %2, %4 : vector<16x128xf32>
    %cst_5 = arith.constant 0.000000e+00 : f32
    %6 = vector.broadcast %cst_5 : f32 to vector<16x128xf32>
    %7 = arith.maximumf %5, %6 : vector<16x128xf32>
    %c0_6 = arith.constant 0 : index
    %c0_7 = arith.constant 0 : index
    %8 = vector.load %arg4[%c0_6, %c0_7] : memref<16x1xf32, #tpu.memory_space<vmem>>, vector<16x1xf32>
    %9 = vector.broadcast %8 : vector<16x1xf32> to vector<16x128xf32>
    %10 = arith.mulf %7, %9 : vector<16x128xf32>
    %cst_8 = arith.constant dense<0.000000e+00> : vector<128xf32>
    %11 = vector.multi_reduction <add>, %10, %cst_8 [0] : vector<16x128xf32> to vector<128xf32>
    %12 = vector.shape_cast %11 : vector<128xf32> to vector<1x128xf32>
    %c0_9 = arith.constant 0 : index
    %c0_10 = arith.constant 0 : index
    %13 = vector.load %arg5[%c0_9, %c0_10] : memref<1x1xf32, #tpu.memory_space<vmem>>, vector<1x1xf32>
    %14 = vector.broadcast %13 : vector<1x1xf32> to vector<1x128xf32>
    %15 = arith.addf %12, %14 : vector<1x128xf32>
    %cst_11 = arith.constant 0.000000e+00 : f32
    %16 = vector.broadcast %cst_11 : f32 to vector<1x128xf32>
    %17 = arith.subf %16, %15 : vector<1x128xf32>
    %18 = math.exp %17 : vector<1x128xf32>
    %cst_12 = arith.constant 1.000000e+00 : f32
    %19 = vector.broadcast %cst_12 : f32 to vector<1x128xf32>
    %20 = arith.addf %19, %18 : vector<1x128xf32>
    %21 = tpu.reciprocal %20 {approx = true} : vector<1x128xf32> -> vector<1x128xf32>
    %c0_13 = arith.constant 0 : index
    %c0_14 = arith.constant 0 : index
    %22 = vector.load %arg6[%c0_13, %c0_14] : memref<1x128xf32, #tpu.memory_space<vmem>>, vector<1x128xf32>
    tpu.vector_store %arg6[%c0_13, %c0_14], %21 {strides = array<i32>} : memref<1x128xf32, #tpu.memory_space<vmem>>, vector<1x128xf32>,
    return
  }
  func.func @transform_0(%arg0: i32) -> (i32, i32) {
    %c0_i32 = arith.constant 0 : i32
    %c0_i32_0 = arith.constant 0 : i32
    return %arg0, %c0_i32 : i32, i32
  }
  func.func @transform_1(%arg0: i32) -> (i32, i32) {
    %c0_i32 = arith.constant 0 : i32
    %c0_i32_0 = arith.constant 0 : i32
    %c0_i32_1 = arith.constant 0 : i32
    return %c0_i32, %c0_i32_0 : i32, i32
  }
  func.func @transform_2(%arg0: i32) -> (i32, i32) {
    %c0_i32 = arith.constant 0 : i32
    %c0_i32_0 = arith.constant 0 : i32
    %c0_i32_1 = arith.constant 0 : i32
    return %c0_i32, %c0_i32_0 : i32, i32
  }
  func.func @transform_3(%arg0: i32) -> (i32, i32) {
    %c0_i32 = arith.constant 0 : i32
    %c0_i32_0 = arith.constant 0 : i32
    %c0_i32_1 = arith.constant 0 : i32
    return %c0_i32, %c0_i32_0 : i32, i32
  }
  func.func @transform_4(%arg0: i32) -> (i32, i32) {
    %c0_i32 = arith.constant 0 : i32
    %c0_i32_0 = arith.constant 0 : i32
    %c0_i32_1 = arith.constant 0 : i32
    return %c0_i32, %c0_i32_0 : i32, i32
  }
  func.func @transform_5(%arg0: i32) -> (i32, i32) {
    %c0_i32 = arith.constant 0 : i32
    %c0_i32_0 = arith.constant 0 : i32
    return %c0_i32, %arg0 : i32, i32
  }
}

</mosaic_0001>

<llo_original>
// kernel: tpu_custom_call.1
$region0: #{tpu_custom_call.1}
  #allocation0 [shape = 'u32[]', space=smem, size = 0x4, offset = 0x4, fixed_abs, tag = 'smem constant byte address 0x4 - core index']
  #allocation1 [shape = 'u32[144,128]{1,0:T(1,128)}', space=vmem, size = 0x12000, scoped, tag = 'internal scratch']
  #allocation2 [shape = 'f32[1,1]{1,0:T(1,128)S(1)}', space=vmem, size = 0x200, scoped, tag = 'scoped memory for tpu_custom_call.1']
  %s0 = inlined_call_operand.vmem [shape: f32[8,32], index: 0, kind: input, shape index: {}]
  %s1 = inlined_call_operand.vmem [shape: f32[16,32], index: 1, kind: input, shape index: {}]
  %s2 = inlined_call_operand.vmem [shape: f32[16,1], index: 2, kind: input, shape index: {}]
  %s3 = inlined_call_operand.vmem [shape: f32[16,1], index: 3, kind: input, shape index: {}]
  %s4 = inlined_call_operand.<no memory space> [shape: f32[1,1], index: 4, kind: input, shape index: {}]
  %s5 = inlined_call_operand.hbm [shape: f32[1,8], index: 5, kind: output, shape index: {}]
  %s6 = sld [smem:[#allocation0]]
  $region30: #{tpu_custom_call.1} parent=0
    _
  %s8 = ssub.s32 1, %s6
  %s9 = scalar_select 0, %s8, %s6
  %v10 = vstv %s4
  %11 = vst [vmem:[#allocation2] sm:$0x1] %v10
  $region1: #{tpu_custom_call.1} parent=0
    #allocation3 [shape = 'u8[512]{0}', space=vmem, size = 0x400, scoped, tag = 'output window, operand 0, single buffered']
    #allocation4 [shape = 's32[1]{0}', space=sflag, size = 0x4, scoped, tag = 'scoped memory for tpu_custom_call.1']
    %12 = vsyncpa [#allocation4], 0
    // Predicated region
    $region2: #{tpu_custom_call.1} parent=1 // pred_check
      _
    $region3: #{tpu_custom_call.1} parent=1 // pred_check_branch
      %14 = sbr.rel (0) target = $region5
    $region4: #{tpu_custom_call.1} parent=1 // pred_region
      _
    $region5: #{tpu_custom_call.1} parent=1 // pred_fallthru
      _
    // Predicated region
    $region6: #{tpu_custom_call.1} parent=1 // pred_check
      _
    $region7: #{tpu_custom_call.1} parent=1 // pred_check_branch
      %16 = sbr.rel (0) target = $region9
    $region8: #{tpu_custom_call.1} parent=1 // pred_region
      _
    $region9: #{tpu_custom_call.1} parent=1 // pred_fallthru
      _
    // Predicated region
    $region10: #{tpu_custom_call.1} parent=1 // pred_check
      _
    $region11: #{tpu_custom_call.1} parent=1 // pred_check_branch
      %18 = sbr.rel (0) target = $region13
    $region12: #{tpu_custom_call.1} parent=1 // pred_region
      _
    $region13: #{tpu_custom_call.1} parent=1 // pred_fallthru
      _
    // Predicated region
    $region14: #{tpu_custom_call.1} parent=1 // pred_check
      _
    $region15: #{tpu_custom_call.1} parent=1 // pred_check_branch
      %20 = sbr.rel (0) target = $region17
    $region16: #{tpu_custom_call.1} parent=1 // pred_region
      _
    $region17: #{tpu_custom_call.1} parent=1 // pred_fallthru
      _
    // Predicated region
    $region18: #{tpu_custom_call.1} parent=1 // pred_check
      _
    $region19: #{tpu_custom_call.1} parent=1 // pred_check_branch
      %22 = sbr.rel (0) target = $region21
    $region20: #{tpu_custom_call.1} parent=1 // pred_region
      _
    $region21: #{tpu_custom_call.1} parent=1 // pred_fallthru
      _
    %v23 = vld [vmem:[%s1] sm:$0xff]
    %v24 = vld [vmem:[%s1 + $0x8] sm:$0xff]
    %v25 = vld [vmem:[%s0] sm:$0xff]
    %v26 = vld [vmem:[%s0 + $0x8] sm:$0xff]
    %v27 = vld [vmem:[%s0 + $0x10] sm:$0xff]
    %v28 = vld [vmem:[%s0 + $0x18] sm:$0xff]
    %v29 = vld [vmem:[%s0 + $0x20] sm:$0xff]
    %v30 = vld [vmem:[%s0 + $0x28] sm:$0xff]
    %v31 = vld [vmem:[%s0 + $0x30] sm:$0xff]
    %v32 = vld [vmem:[%s0 + $0x38] sm:$0xff]
    %v33 = vld [vmem:[%s0 + $0x40] sm:$0xff]
    %v34 = vld [vmem:[%s0 + $0x48] sm:$0xff]
    %v35 = vld [vmem:[%s0 + $0x50] sm:$0xff]
    %v36 = vld [vmem:[%s0 + $0x58] sm:$0xff]
    %v37 = vld [vmem:[%s0 + $0x60] sm:$0xff]
    %v38 = vld [vmem:[%s0 + $0x68] sm:$0xff]
    %v39 = vld [vmem:[%s0 + $0x70] sm:$0xff]
    %v40 = vld [vmem:[%s0 + $0x78] sm:$0xff]
    %v41 = vld [vmem:[%s2] sm:$0xff]
    %v42 = vld [vmem:[%s2 + $0x8] sm:$0xff]
    %44 = vset.pattern.permute.xlu0 0
    %45 = vperm.xlu0 %44, %v41
    %v46 = vpop.permute.xlu0 %45
    %49 = vset.pattern.permute.xlu0 0
    %50 = vperm.xlu0 %49, %v42
    %v51 = vpop.permute.xlu0 %50
    %vm53 = vcmask 261120
    %v55 = vsel %vm53, %v23, 0
    %v58 = vsel %vm53, %v24, 0
    %v61 = vsel %vm53, %v25, 0
    %v64 = vsel %vm53, %v26, 0
    %v67 = vsel %vm53, %v27, 0
    %v70 = vsel %vm53, %v28, 0
    %v73 = vsel %vm53, %v29, 0
    %v76 = vsel %vm53, %v30, 0
    %v79 = vsel %vm53, %v31, 0
    %v82 = vsel %vm53, %v32, 0
    %v85 = vsel %vm53, %v33, 0
    %v88 = vsel %vm53, %v34, 0
    %v91 = vsel %vm53, %v35, 0
    %v94 = vsel %vm53, %v36, 0
    %v97 = vsel %vm53, %v37, 0
    %v100 = vsel %vm53, %v38, 0
    %v103 = vsel %vm53, %v39, 0
    %v106 = vsel %vm53, %v40, 0
    %108 = vmatprep.subr.mxu0 0.0
    %109 = vmatpush1.xpose.msra.mxu0 %v61
    %110 = vmatprep.subr.mxu0 0.0
    %111 = vmatpush1.xpose.msra.mxu0 %v64
    %112 = vmatprep.subr.mxu0 0.0
    %113 = vmatpush1.xpose.msra.mxu0 %v67
    %114 = vmatprep.subr.mxu0 0.0
    %115 = vmatpush1.xpose.msra.mxu0 %v70
    %116 = vmatprep.subr.mxu0 0.0
    %117 = vmatpush1.xpose.msra.mxu0 %v73
    %118 = vmatprep.subr.mxu0 0.0
    %119 = vmatpush1.xpose.msra.mxu0 %v76
    %120 = vmatprep.subr.mxu0 0.0
    %121 = vmatpush1.xpose.msra.mxu0 %v79
    %122 = vmatprep.subr.mxu0 0.0
    %123 = vmatpush1.xpose.msra.mxu0 %v82
    %124 = vmatprep.subr.mxu0 0.0
    %125 = vmatpush1.xpose.msra.mxu0 %v85
    %126 = vmatprep.subr.mxu0 0.0
    %127 = vmatpush1.xpose.msra.mxu0 %v88
    %128 = vmatprep.subr.mxu0 0.0
    %129 = vmatpush1.xpose.msra.mxu0 %v91
    %130 = vmatprep.subr.mxu0 0.0
    %131 = vmatpush1.xpose.msra.mxu0 %v94
    %132 = vmatprep.subr.mxu0 0.0
    %133 = vmatpush1.xpose.msra.mxu0 %v97
    %134 = vmatprep.subr.mxu0 0.0
    %135 = vmatpush1.xpose.msra.mxu0 %v100
    %136 = vmatprep.subr.mxu0 0.0
    %137 = vmatpush1.xpose.msra.mxu0 %v103
    %138 = vmatprep.subr.mxu0 0.0
    %139 = vmatpush1.xpose.msra.mxu0 %v106
    %140 = vmatprep.subr.mxu0 0.0
    %141 = vmatpush1.xpose.msra.mxu0 0.0
    %142 = vmatprep.subr.mxu0 0.0
    %143 = vmatpush1.xpose.msra.mxu0 0.0
    %144 = vmatprep.subr.mxu0 0.0
    %145 = vmatpush1.xpose.msra.mxu0 0.0
    %146 = vmatprep.subr.mxu0 0.0
    %147 = vmatpush1.xpose.msra.mxu0 0.0
    %148 = vmatprep.subr.mxu0 0.0
    %149 = vmatpush1.xpose.msra.mxu0 0.0
    %150 = vmatprep.subr.mxu0 0.0
    %151 = vmatpush1.xpose.msra.mxu0 0.0
    %152 = vmatprep.subr.mxu0 0.0
    %153 = vmatpush1.xpose.msra.mxu0 0.0
    %154 = vmatprep.subr.mxu0 0.0
    %155 = vmatpush1.xpose.msra.mxu0 0.0
    %156 = vmatprep.subr.mxu0 0.0
    %157 = vmatpush1.xpose.msra.mxu0 0.0
    %158 = vmatprep.subr.mxu0 0.0
    %159 = vmatpush1.xpose.msra.mxu0 0.0
    %160 = vmatprep.subr.mxu0 0.0
    %161 = vmatpush1.xpose.msra.mxu0 0.0
    %162 = vmatprep.subr.mxu0 0.0
    %163 = vmatpush1.xpose.msra.mxu0 0.0
    %164 = vmatprep.subr.mxu0 0.0
    %165 = vmatpush1.xpose.msra.mxu0 0.0
    %166 = vmatprep.subr.mxu0 0.0
    %167 = vmatpush1.xpose.msra.mxu0 0.0
    %168 = vmatprep.subr.mxu0 0.0
    %169 = vmatpush1.xpose.msra.mxu0 0.0
    %170 = vmatprep.subr.mxu0 0.0
    %171 = vmatpush1.xpose.msra.mxu0 0.0
    %172 = vmatprep.mubr.f32.mxu0 0.0
    %173 = vmatmul.mubr.f32.gmra.mrb[0].mxu0 %v55
    %v174 = vpop.f32.mrb[0].mxu0
    %v175 = vadd.f32 %v46, %v174
    %v176 = vpop.f32.mrb[0].mxu0
    %177 = vmatprep.mubr.f32.mxu0 0.0
    %178 = vmatmul.mubr.f32.gmra.mrb[0].mxu0 %v58
    %v179 = vpop.f32.mrb[0].mxu0
    %v180 = vadd.f32 %v51, %v179
    %v181 = vpop.f32.mrb[0].mxu0
    %182 = vdwg.mxu0
    %v183 = vmax.f32 %v175, 0.0
    %v184 = vmax.f32 %v180, 0.0
    %v185 = vld [vmem:[%s3] sm:$0xff]
    %v186 = vld [vmem:[%s3 + $0x8] sm:$0xff]
    %188 = vset.pattern.permute.xlu0 0
    %189 = vperm.xlu0 %188, %v185
    %v190 = vpop.permute.xlu0 %189
    %193 = vset.pattern.permute.xlu0 0
    %194 = vperm.xlu0 %193, %v186
    %v195 = vpop.permute.xlu0 %194
    %v197 = vmul.f32 %v183, %v190
    %v198 = vmul.f32 %v184, %v195
    %v199 = vadd.f32 %v197, %v198
    %v200 = vrot.slane %v199, 4
    %v201 = vadd.f32 %v199, %v200
    %v202 = vrot.slane %v201, 2
    %v203 = vadd.f32 %v201, %v202
    %v204 = vrot.slane %v203, 1
    %v205 = vadd.f32 %v203, %v204
    %v206 = vld [vmem:[#allocation2] sm:$0x1]
    %208 = vset.pattern.permute.xlu0 0
    %209 = vperm.xlu0 %208, %v206
    %v210 = vpop.permute.xlu0 %209
    %v212 = vlaneseq
    %v213 = vshrl.u32 %v212, 7
    %v214 = vsub.s32 0, %v213
    %v215 = vrot.slane %v210, %v214
    %v216 = vadd.f32 %v205, %v215
    %v217 = vsub.f32 0.0, %v216
    %v218 = vmul.f32 %v217, 1.442695
    %v219 = vpow.pop %v218
    %v220 = vadd.f32 %v219, 1.0
    %v221 = vrcp.pop %v220
    %222 = vst [vmem:[#allocation3] sm:$0x1] %v221
    // Predicated region
    $region22: #{tpu_custom_call.1} parent=1 // pred_check
      _
    $region23: #{tpu_custom_call.1} parent=1 // pred_check_branch
      %224 = sbr.rel (0) target = $region25
    $region24: #{tpu_custom_call.1} parent=1 // pred_region
      %s226 = ssub.s32 16, 16
      %227 = vsyncadd [#allocation4], %s226
      %s229 = sshll.u32 [#allocation3], 4
      %s230 = int_to_ptr.vmem [resolvable:$true] %s229
      %232 = dma.vmem_to_hbm [thread:$0]  %s230, 16, %s5, [#allocation4]
    $region25: #{tpu_custom_call.1} parent=1 // pred_fallthru
      _
    // Predicated region
    $region26: #{tpu_custom_call.1} parent=1 // pred_check
      _
    $region27: #{tpu_custom_call.1} parent=1 // pred_check_branch
      %234 = sbr.rel (0) target = $region29
    $region28: #{tpu_custom_call.1} parent=1 // pred_region
      %235 = dma.done [#allocation4], 16
    $region29: #{tpu_custom_call.1} parent=1 // pred_fallthru
      _
    %236 = vsyncpa [#allocation4], 1

</llo_original>
